<compile_context>
chip_gen: v7x
topology: tpu7x:2x2x1
jax: 0.10.0
libtpu: 0.0.40
codegen_flags: <defaults>
</compile_context>

<pallas_src>
import functools

import jax
import jax.numpy as jnp
from jax.experimental import pallas as pl
from jax.experimental.pallas import tpu as pltpu


def ca_kernel(x_ref, w_ref, b_ref, eps_ref, out_ref):
    c_dim = eps_ref.shape[1]
    tb = out_ref.shape[0]
    out_w = out_ref.shape[1]
    two_c = 2 * c_dim

    # Linear on the MXU: bf16 operands, f32 accumulation.
    h = jnp.dot(
        x_ref[...].astype(jnp.bfloat16),
        w_ref[...],
        preferred_element_type=jnp.float32,
    )
    h = h + b_ref[...]  # b_ref is (1, 4*c_dim), broadcasts over the batch tile

    # GLU along the feature dim (torch nn.GLU(1)): a * sigmoid(gate).
    # NOTE: when c_dim is a multiple of 128 these split points fall on
    # 128-lane boundaries (whole-vreg selects); at toy sizes the whole row
    # fits in one vreg anyway.
    glu = h[:, :two_c] * jax.nn.sigmoid(h[:, two_c:])  # (tb, 2c) = [mu | logvar]

    mu = glu[:, :c_dim]
    logvar = glu[:, c_dim:]

    # Reparametrization trick (f32 on VPU/EUP).
    c_code = eps_ref[...] * jnp.exp(0.5 * logvar) + mu

    # Fused lane-dense output slab: [c_code | mu | logvar | 0-pad], one
    # (tb, out_w) writeback DMA per grid step.
    out_ref[:, 0:c_dim] = c_code
    out_ref[:, c_dim:two_c] = mu
    out_ref[:, two_c:3 * c_dim] = logvar
    pad = out_w - 3 * c_dim
    if pad > 0:
        out_ref[:, 3 * c_dim:] = jnp.zeros((tb, pad), jnp.float32)


def _round_up(x, m):
    return ((x + m - 1) // m) * m


@functools.partial(jax.jit, static_argnames=("block_b",))
def ca_forward(text_embedding, w, b, eps, *, block_b=512):
    """Pallas CA forward. Returns (c_code, mu, logvar), each (B, c_dim) f32."""
    B, t_dim = text_embedding.shape
    c_dim = eps.shape[1]
    four_c = w.shape[1]
    assert four_c == 4 * c_dim

    # Lane-dense fused output width (multiple of 128).
    out_w = max(128, _round_up(3 * c_dim, 128))

    # Batch tile: sublane-aligned; pad B so the grid divides evenly.
    tb = max(8, _round_up(min(block_b, B), 8))
    b_pad = pl.cdiv(B, tb) * tb
    if b_pad != B:
        text_embedding = jnp.pad(text_embedding, ((0, b_pad - B), (0, 0)))
        eps = jnp.pad(eps, ((0, b_pad - B), (0, 0)))

    # bf16 weight halves the resident-weight bytes and feeds the MXU directly.
    w_bf16 = w.astype(jnp.bfloat16)
    b2d = b.reshape(1, four_c).astype(jnp.float32)

    grid = (b_pad // tb,)

    # Scoped-VMEM budget: double-buffered x/eps/out blocks + resident w/b,
    # with headroom; capped so it is safe on v7x (64 MiB/TC physical).
    per_block = 2 * (tb * t_dim * 4 + tb * c_dim * 4 + tb * out_w * 4)
    resident = t_dim * four_c * 2 + four_c * 4
    vmem_limit = int(min(32 << 20, max(8 << 20, 2 * (per_block + resident))))

    out = pl.pallas_call(
        ca_kernel,
        out_shape=jax.ShapeDtypeStruct((b_pad, out_w), jnp.float32),
        grid_spec=pltpu.PrefetchScalarGridSpec(
            num_scalar_prefetch=0,
            grid=grid,
            in_specs=[
                pl.BlockSpec((tb, t_dim), lambda i: (i, 0)),      # x tile
                pl.BlockSpec((t_dim, four_c), lambda i: (0, 0)),  # weight (resident)
                pl.BlockSpec((1, four_c), lambda i: (0, 0)),      # bias (resident)
                pl.BlockSpec((tb, c_dim), lambda i: (i, 0)),      # eps tile
            ],
            out_specs=pl.BlockSpec((tb, out_w), lambda i: (i, 0)),
        ),
        compiler_params=pltpu.CompilerParams(
            dimension_semantics=("parallel",),
            vmem_limit_bytes=vmem_limit,
        ),
    )(text_embedding, w_bf16, b2d, eps)

    c_code = out[:B, :c_dim]
    mu = out[:B, c_dim:2 * c_dim]
    logvar = out[:B, 2 * c_dim:3 * c_dim]
    return c_code, mu, logvar


def reference_forward(text_embedding, w, b, eps):
    """Pure-JAX f32 reference mirroring the PyTorch module."""
    h = text_embedding @ w + b
    two_c = h.shape[1] // 2
    x = h[:, :two_c] * jax.nn.sigmoid(h[:, two_c:])
    c_dim = two_c // 2
    mu = x[:, :c_dim]
    logvar = x[:, c_dim:]
    std = jnp.exp(0.5 * logvar)
    return eps * std + mu, mu, logvar


if __name__ == "__main__":
    # Small shapes consistent with the module: t_dim=32, c_dim=16, batch=8.
    t_dim, c_dim = 32, 16

    key = jax.random.PRNGKey(0)
    k_x, k_w, k_b, k_eps, k_x2, k_eps2 = jax.random.split(key, 6)

    # Deterministic param init (PyTorch Linear-style uniform bounds).
    bound = 1.0 / (t_dim ** 0.5)
    w = jax.random.uniform(k_w, (t_dim, 4 * c_dim), jnp.float32, -bound, bound)
    b = jax.random.uniform(k_b, (4 * c_dim,), jnp.float32, -bound, bound)

    # --- case 1: toy batch, single grid step ------------------------------
    B = 8
    text_embedding = jax.random.normal(k_x, (B, t_dim), dtype=jnp.float32)
    eps = jax.random.normal(k_eps, (B, c_dim), dtype=jnp.float32)

    c_code, mu, logvar = ca_forward(text_embedding, w, b, eps)
    jax.block_until_ready((c_code, mu, logvar))

    c_ref, mu_ref, lv_ref = reference_forward(text_embedding, w, b, eps)
    # bf16 MXU operands (f32 accumulation) => compare loosely vs f32 reference.
    assert jnp.allclose(c_code, c_ref, atol=5e-2, rtol=5e-2)
    assert jnp.allclose(mu, mu_ref, atol=5e-2, rtol=5e-2)
    assert jnp.allclose(logvar, lv_ref, atol=5e-2, rtol=5e-2)

    # --- case 2: larger batch exercising the grid + batch padding ---------
    B2 = 200  # not a multiple of the tile -> padded to 256, grid=(4,)
    x2 = jax.random.normal(k_x2, (B2, t_dim), dtype=jnp.float32)
    eps2 = jax.random.normal(k_eps2, (B2, c_dim), dtype=jnp.float32)

    c2, mu2, lv2 = ca_forward(x2, w, b, eps2, block_b=64)
    jax.block_until_ready((c2, mu2, lv2))

    c2_ref, mu2_ref, lv2_ref = reference_forward(x2, w, b, eps2)
    assert jnp.allclose(c2, c2_ref, atol=5e-2, rtol=5e-2)
    assert jnp.allclose(mu2, mu2_ref, atol=5e-2, rtol=5e-2)
    assert jnp.allclose(lv2, lv2_ref, atol=5e-2, rtol=5e-2)

    print("KERNEL_OK")
</pallas_src>

<mosaic_0001>
module attributes {stable_mosaic.version = 11 : i64} {
  func.func @ca_kernel(%arg0: i32, %arg1: memref<8x32xf32, #tpu.memory_space<vmem>>, %arg2: memref<32x64xbf16, #tpu.memory_space<vmem>>, %arg3: memref<1x64xf32, #tpu.memory_space<vmem>>, %arg4: memref<8x16xf32, #tpu.memory_space<vmem>>, %arg5: memref<8x128xf32, #tpu.memory_space<vmem>>) attributes {dimension_semantics = [#tpu.dimension_semantics<parallel>], iteration_bounds = array<i64: 1>, scalar_prefetch = 0 : i64, scratch_operands = 0 : i64, tpu.core_type = #tpu.core_type<tc>, window_params = [{transform_indices = @transform_0, window_bounds = array<i64: 8, 32>}, {pipeline_mode = #tpu.pipeline_mode<synchronous>, transform_indices = @transform_1, window_bounds = array<i64: 32, 64>}, {pipeline_mode = #tpu.pipeline_mode<synchronous>, transform_indices = @transform_2, window_bounds = array<i64: 1, 64>}, {transform_indices = @transform_3, window_bounds = array<i64: 8, 16>}, {transform_indices = @transform_4, window_bounds = array<i64: 8, 128>}]} {
    %c0 = arith.constant 0 : index
    %c0_0 = arith.constant 0 : index
    %0 = vector.load %arg1[%c0, %c0_0] : memref<8x32xf32, #tpu.memory_space<vmem>>, vector<8x32xf32>
    %1 = arith.truncf %0 : vector<8x32xf32> to vector<8x32xbf16>
    %c0_1 = arith.constant 0 : index
    %c0_2 = arith.constant 0 : index
    %2 = vector.load %arg2[%c0_1, %c0_2] : memref<32x64xbf16, #tpu.memory_space<vmem>>, vector<32x64xbf16>
    %cst = arith.constant dense<0.000000e+00> : vector<8x64xf32>
    %3 = tpu.matmul %1, %2, %cst {dimension_numbers = #tpu.dot_dimension_numbers<[1], [0], [0], [1], [0, 0, 1, 1], [], []>} : vector<8x32xbf16>, vector<32x64xbf16>, vector<8x64xf32> -> vector<8x64xf32>
    %c0_3 = arith.constant 0 : index
    %c0_4 = arith.constant 0 : index
    %4 = vector.load %arg3[%c0_3, %c0_4] : memref<1x64xf32, #tpu.memory_space<vmem>>, vector<1x64xf32>
    %5 = vector.broadcast %4 : vector<1x64xf32> to vector<8x64xf32>
    %6 = arith.addf %3, %5 : vector<8x64xf32>
    %7 = vector.extract_strided_slice %6 {offsets = [0, 0], sizes = [8, 32], strides = [1, 1]} : vector<8x64xf32> to vector<8x32xf32>
    %8 = vector.extract_strided_slice %6 {offsets = [0, 32], sizes = [8, 32], strides = [1, 1]} : vector<8x64xf32> to vector<8x32xf32>
    %9 = arith.negf %8 : vector<8x32xf32>
    %10 = math.exp %9 : vector<8x32xf32>
    %cst_5 = arith.constant 1.000000e+00 : f32
    %11 = vector.broadcast %cst_5 : f32 to vector<8x32xf32>
    %12 = arith.addf %11, %10 : vector<8x32xf32>
    %13 = arith.divf %11, %12 : vector<8x32xf32>
    %14 = arith.mulf %7, %13 : vector<8x32xf32>
    %15 = vector.extract_strided_slice %14 {offsets = [0, 0], sizes = [8, 16], strides = [1, 1]} : vector<8x32xf32> to vector<8x16xf32>
    %16 = vector.extract_strided_slice %14 {offsets = [0, 16], sizes = [8, 16], strides = [1, 1]} : vector<8x32xf32> to vector<8x16xf32>
    %c0_6 = arith.constant 0 : index
    %c0_7 = arith.constant 0 : index
    %17 = vector.load %arg4[%c0_6, %c0_7] : memref<8x16xf32, #tpu.memory_space<vmem>>, vector<8x16xf32>
    %cst_8 = arith.constant 5.000000e-01 : f32
    %18 = vector.broadcast %cst_8 : f32 to vector<8x16xf32>
    %19 = arith.mulf %18, %16 : vector<8x16xf32>
    %20 = math.exp %19 : vector<8x16xf32>
    %21 = arith.mulf %17, %20 : vector<8x16xf32>
    %22 = arith.addf %21, %15 : vector<8x16xf32>
    %c0_9 = arith.constant 0 : index
    %c0_10 = arith.constant 0 : index
    %23 = vector.load %arg5[%c0_9, %c0_10] : memref<8x128xf32, #tpu.memory_space<vmem>>, vector<8x16xf32>
    tpu.vector_store %arg5[%c0_9, %c0_10], %22 {strides = array<i32>} : memref<8x128xf32, #tpu.memory_space<vmem>>, vector<8x16xf32>,
    %c0_11 = arith.constant 0 : index
    %c16 = arith.constant 16 : index
    %24 = vector.load %arg5[%c0_11, %c16] : memref<8x128xf32, #tpu.memory_space<vmem>>, vector<8x16xf32>
    tpu.vector_store %arg5[%c0_11, %c16], %15 {strides = array<i32>} : memref<8x128xf32, #tpu.memory_space<vmem>>, vector<8x16xf32>,
    %c0_12 = arith.constant 0 : index
    %c32 = arith.constant 32 : index
    %25 = vector.load %arg5[%c0_12, %c32] : memref<8x128xf32, #tpu.memory_space<vmem>>, vector<8x16xf32>
    tpu.vector_store %arg5[%c0_12, %c32], %16 {strides = array<i32>} : memref<8x128xf32, #tpu.memory_space<vmem>>, vector<8x16xf32>,
    %cst_13 = arith.constant 0.000000e+00 : f32
    %26 = vector.broadcast %cst_13 : f32 to vector<8x80xf32>
    %c0_14 = arith.constant 0 : index
    %c48 = arith.constant 48 : index
    %27 = vector.load %arg5[%c0_14, %c48] : memref<8x128xf32, #tpu.memory_space<vmem>>, vector<8x80xf32>
    tpu.vector_store %arg5[%c0_14, %c48], %26 {strides = array<i32>} : memref<8x128xf32, #tpu.memory_space<vmem>>, vector<8x80xf32>,
    return
  }
  func.func @transform_0(%arg0: i32) -> (i32, i32) {
    %c0_i32 = arith.constant 0 : i32
    %c0_i32_0 = arith.constant 0 : i32
    return %arg0, %c0_i32 : i32, i32
  }
  func.func @transform_1(%arg0: i32) -> (i32, i32) {
    %c0_i32 = arith.constant 0 : i32
    %c0_i32_0 = arith.constant 0 : i32
    %c0_i32_1 = arith.constant 0 : i32
    return %c0_i32, %c0_i32_0 : i32, i32
  }
  func.func @transform_2(%arg0: i32) -> (i32, i32) {
    %c0_i32 = arith.constant 0 : i32
    %c0_i32_0 = arith.constant 0 : i32
    %c0_i32_1 = arith.constant 0 : i32
    return %c0_i32, %c0_i32_0 : i32, i32
  }
  func.func @transform_3(%arg0: i32) -> (i32, i32) {
    %c0_i32 = arith.constant 0 : i32
    %c0_i32_0 = arith.constant 0 : i32
    return %arg0, %c0_i32 : i32, i32
  }
  func.func @transform_4(%arg0: i32) -> (i32, i32) {
    %c0_i32 = arith.constant 0 : i32
    %c0_i32_0 = arith.constant 0 : i32
    return %arg0, %c0_i32 : i32, i32
  }
}

</mosaic_0001>

<llo_original>
// kernel: ca_forward.1
$region0: #{ca_forward.1}
  #allocation0 [shape = 'u32[]', space=smem, size = 0x4, offset = 0x4, fixed_abs, tag = 'smem constant byte address 0x4 - core index']
  #allocation1 [shape = 'u32[144,128]{1,0:T(1,128)}', space=vmem, size = 0x12000, scoped, tag = 'internal scratch']
  %s0 = inlined_call_operand.vmem [shape: f32[8,32], index: 0, kind: input, shape index: {}]
  %s1 = inlined_call_operand.vmem [shape: bf16[32,64], index: 1, kind: input, shape index: {}]
  %s2 = inlined_call_operand.vmem [shape: f32[1,64], index: 2, kind: input, shape index: {}]
  %s3 = inlined_call_operand.vmem [shape: f32[8,16], index: 3, kind: input, shape index: {}]
  %s4 = inlined_call_operand.vmem [shape: f32[8,128], index: 4, kind: output, shape index: {}]
  %s5 = sld [smem:[#allocation0]]
  $region26: #{ca_forward.1} parent=0
    _
  %s7 = ssub.s32 1, %s5
  %s8 = scalar_select 0, %s7, %s5
  // Predicated region
  $region2: #{ca_forward.1} parent=0 // pred_check
    _
  $region3: #{ca_forward.1} parent=0 // pred_check_branch
    %10 = sbr.rel (0) target = $region5
  $region4: #{ca_forward.1} parent=0 // pred_region
    _
  $region5: #{ca_forward.1} parent=0 // pred_fallthru
    _
  // Predicated region
  $region6: #{ca_forward.1} parent=0 // pred_check
    _
  $region7: #{ca_forward.1} parent=0 // pred_check_branch
    %12 = sbr.rel (0) target = $region9
  $region8: #{ca_forward.1} parent=0 // pred_region
    _
  $region9: #{ca_forward.1} parent=0 // pred_fallthru
    _
  // Predicated region
  $region10: #{ca_forward.1} parent=0 // pred_check
    _
  $region11: #{ca_forward.1} parent=0 // pred_check_branch
    %14 = sbr.rel (0) target = $region13
  $region12: #{ca_forward.1} parent=0 // pred_region
    _
  $region13: #{ca_forward.1} parent=0 // pred_fallthru
    _
  // Predicated region
  $region14: #{ca_forward.1} parent=0 // pred_check
    _
  $region15: #{ca_forward.1} parent=0 // pred_check_branch
    %16 = sbr.rel (0) target = $region17
  $region16: #{ca_forward.1} parent=0 // pred_region
    _
  $region17: #{ca_forward.1} parent=0 // pred_fallthru
    _
  %v18 = vld [vmem:[%s0] sm:$0xff]
  %v19 = vpack.c.bf16 %v18, %v18
  %v20 = vld [vmem:[%s1] sm:$0xf]
  %v21 = vld [vmem:[%s1 + $0x4] sm:$0xf]
  %v22 = vld [vmem:[%s1 + $0x8] sm:$0xf]
  %v23 = vld [vmem:[%s1 + $0xc] sm:$0xf]
  %v24 = vld [vmem:[%s2] sm:$0x1]
  %v26 = vlaneseq
  %v27 = vshrl.u32 %v26, 7
  %v28 = vsub.s32 0, %v27
  %v29 = vrot.slane %v24, %v28
  %v35 = vunpack.c.l.b16 %v20
  %v36 = vunpack.c.l.b16 %v21
  %v37 = vunpack.c.l.b16 %v22
  %v38 = vunpack.c.l.b16 %v23
  %v39 = vpack.c.b16 %v36, %v35
  %v40 = vpack.c.b16 %v38, %v37
  %vm43 = vcmask 261120
  %v45 = vsel %vm43, %v19, 0
  %47 = vmatprep.subr.bf16.mxu0 0
  %48 = vmatpush1.bf16.msra.mxu0 %v39
  %49 = vmatprep.subr.bf16.mxu0 0
  %50 = vmatpush1.bf16.msra.mxu0 %v40
  %51 = vmatprep.subr.bf16.mxu0 0
  %52 = vmatpush1.bf16.msra.mxu0 0
  %53 = vmatprep.subr.bf16.mxu0 0
  %54 = vmatpush1.bf16.msra.mxu0 0
  %55 = vmatprep.subr.bf16.mxu0 0
  %56 = vmatpush1.bf16.msra.mxu0 0
  %57 = vmatprep.subr.bf16.mxu0 0
  %58 = vmatpush1.bf16.msra.mxu0 0
  %59 = vmatprep.subr.bf16.mxu0 0
  %60 = vmatpush1.bf16.msra.mxu0 0
  %61 = vmatprep.subr.bf16.mxu0 0
  %62 = vmatpush1.bf16.msra.mxu0 0
  %63 = vmatprep.subr.bf16.mxu0 0
  %64 = vmatpush1.bf16.msra.mxu0 0
  %65 = vmatprep.subr.bf16.mxu0 0
  %66 = vmatpush1.bf16.msra.mxu0 0
  %67 = vmatprep.subr.bf16.mxu0 0
  %68 = vmatpush1.bf16.msra.mxu0 0
  %69 = vmatprep.subr.bf16.mxu0 0
  %70 = vmatpush1.bf16.msra.mxu0 0
  %71 = vmatprep.subr.bf16.mxu0 0
  %72 = vmatpush1.bf16.msra.mxu0 0
  %73 = vmatprep.subr.bf16.mxu0 0
  %74 = vmatpush1.bf16.msra.mxu0 0
  %75 = vmatprep.subr.bf16.mxu0 0
  %76 = vmatpush1.bf16.msra.mxu0 0
  %77 = vmatprep.subr.bf16.mxu0 0
  %78 = vmatpush1.bf16.msra.mxu0 0
  %79 = vmatprep.mubr.bf16.mxu0 0
  %80 = vmatmul.mubr.bf16.gmra.mrb[0].mxu0 %v45
  %v81 = vpop.f32.mrb[0].mxu0
  %v82 = vadd.f32 %v29, %v81
  %v83 = vpop.f32.mrb[0].mxu0
  %v84 = vpop.f32.mrb[0].mxu0
  %v85 = vpop.f32.mrb[0].mxu0
  %86 = vdwg.mxu0
  %v87 = vxor.u32 %v82, 2147483648
  %v88 = vmul.f32 %v87, 1.442695
  %v89 = vpow.pop %v88
  %v90 = vadd.f32 %v89, 1.0
  %v91 = vrcp.pop %v90
  %v92 = vmul.f32 1.0, %v91
  %94 = vrot.lane.b32.xlu0 %v92, 96
  %v95 = vpop.permute.xlu0 %94
  %v97 = vmul.f32 %v82, %v95
  %v98 = vld [vmem:[%s3] sm:$0xff]
  %v99 = vmul.f32 %v97, 0.5
  %v100 = vmul.f32 %v99, 1.442695
  %v101 = vpow.pop %v100
  %103 = vrot.lane.b32.xlu0 %v101, 112
  %v104 = vpop.permute.xlu0 %103
  %v106 = vmul.f32 %v98, %v104
  %v107 = vadd.f32 %v106, %v97
  %vm108 = vcmask 130048
  %109 = vst.msk [vmem:[%s4] sm:$0xff] %vm108, %v107
  %111 = vrot.lane.b32.xlu0 %v97, 16
  %v112 = vpop.permute.xlu0 %111
  %vm114 = vcmask 261248
  %115 = vst.msk [vmem:[%s4] sm:$0xff] %vm114, %v112
  %vm116 = vcmask 392448
  %117 = vst.msk [vmem:[%s4] sm:$0xff] %vm116, %v112
  %vm118 = vcmask 1047936
  %119 = vst.msk [vmem:[%s4] sm:$0xff] %vm118, 0.0
  // Predicated region
  $region18: #{ca_forward.1} parent=0 // pred_check
    _
  $region19: #{ca_forward.1} parent=0 // pred_check_branch
    %121 = sbr.rel (0) target = $region21
  $region20: #{ca_forward.1} parent=0 // pred_region
    _
  $region21: #{ca_forward.1} parent=0 // pred_fallthru
    _
  // Predicated region
  $region22: #{ca_forward.1} parent=0 // pred_check
    _
  $region23: #{ca_forward.1} parent=0 // pred_check_branch
    %123 = sbr.rel (0) target = $region25
  $region24: #{ca_forward.1} parent=0 // pred_region
    _
  $region25: #{ca_forward.1} parent=0 // pred_fallthru
    _

</llo_original>
